<compile_context>
chip_gen: v6e
topology: v6e:2x2x1
jax: 0.10.0
libtpu: 0.0.40
codegen_flags: <defaults>
</compile_context>

<pallas_src>
import jax
import jax.numpy as jnp
from jax import lax
from jax.experimental import pallas as pl
from jax.experimental.pallas import tpu as pltpu


# ----------------------------- Pallas kernel --------------------------------

def _embed_kernel(patches_ref, w_ref, consts_ref, lab_ref, emb_ref, lab_emb_ref):
    # patches_ref: (B*T, K)  bf16  im2col patches; row 0 of each batch block is
    #                              zeros (becomes the cls row after the add).
    # w_ref:       (hid, K)  bf16  conv weight reshaped (not transposed).
    # consts_ref:  (B*T + 1 + L, hid) f32 packed constants:
    #                rows [0, B*T)      : tiled (cls+pos0 ; pos[1:]+conv_bias)
    #                row  [B*T]         : lab Linear(1,hid) weight row
    #                rows [B*T+1, end)  : pe_lab + lab bias
    # lab_ref:     (B, L)    f32 lab values
    # emb_ref:     (B*T, hid)  f32 output slab (reshaped to (B,T,hid) outside)
    # lab_emb_ref: (B*L, hid)  f32 output slab (reshaped to (B,L,hid) outside)
    B, L = lab_ref.shape
    BT, hid = emb_ref.shape

    consts = consts_ref[...]
    add_rows = consts[:BT]             # (B*T, hid)
    lab_w = consts[BT:BT + 1]          # (1, hid)
    lab_pe = consts[BT + 1:]           # (L, hid)

    # Single MXU pass covering every batch element (and the zero cls rows):
    # (B*T, K) @ (hid, K)^T with f32 accumulation.
    pe = lax.dot_general(
        patches_ref[...], w_ref[...],
        dimension_numbers=(((1,), (1,)), ((), ())),
        preferred_element_type=jnp.float32)                 # (B*T, hid)

    # One dense whole-ref store per output; all adds in f32 on the VPU.
    emb_ref[...] = (pe + add_rows).astype(emb_ref.dtype)

    lab_vals = lab_ref[...]                                 # (B, L) f32
    lab_out = lab_vals[..., None] * lab_w[None] + lab_pe[None]   # (B, L, hid)
    lab_emb_ref[...] = lab_out.reshape(B * L, hid).astype(lab_emb_ref.dtype)


# ------------------------------ JAX wrapper ----------------------------------

def _extract_patches(img, ph, pw):
    """NCHW image -> (B, n_patches, C*ph*pw), patch order = row-major over grid."""
    B, C, H, W = img.shape
    gh, gw = H // ph, W // pw
    x = img.reshape(B, C, gh, ph, gw, pw)
    x = jnp.transpose(x, (0, 2, 4, 1, 3, 5))               # (B, gh, gw, C, ph, pw)
    return x.reshape(B, gh * gw, C * ph * pw)


def embeddings_forward(img, lab, params, patch_size):
    B, C, H, W = img.shape
    ph, pw = patch_size
    n_patches = (H // ph) * (W // pw)
    T = 1 + n_patches
    hid = params["conv_b"].shape[0]
    K = C * ph * pw
    L = lab.shape[1]

    # --- glue: im2col + cls zero-row padding + constant folding (all in the
    #     wrapper, folded by XLA) ---
    patches = _extract_patches(img, ph, pw)                              # (B, n_patches, K)
    patches_pad = jnp.concatenate(
        [jnp.zeros((B, 1, K), patches.dtype), patches], axis=1)         # (B, T, K)
    patches2d = patches_pad.reshape(B * T, K).astype(jnp.bfloat16)      # (B*T, K)

    w_hk = params["conv_w"].reshape(hid, K).astype(jnp.bfloat16)        # (hid, K)

    cls_row = params["cls_token"][0] + params["pos_emb"][0, :1, :]      # (1, hid)
    pos_plus_bias = params["pos_emb"][0, 1:, :] + params["conv_b"][None, :]  # (n_patches, hid)
    add_rows = jnp.concatenate([cls_row, pos_plus_bias], axis=0)        # (T, hid)
    add_tiled = jnp.tile(add_rows, (B, 1))                              # (B*T, hid)

    lab_w_row = params["lab_w"].reshape(1, hid)                         # (1, hid)
    lab_pe_bias = params["pe_lab"][0] + params["lab_b"][None, :]        # (L, hid)

    # Pack all small constants into a single input DMA stream.
    consts = jnp.concatenate(
        [add_tiled, lab_w_row, lab_pe_bias], axis=0).astype(jnp.float32)  # (B*T+1+L, hid)

    flops = 2 * (B * T) * K * hid + 3 * B * L * hid
    bytes_accessed = (patches2d.size * 2 + w_hk.size * 2
                      + consts.size * 4 + lab.size * 4
                      + (B * T * hid + B * L * hid) * 4)
    cost = pl.CostEstimate(flops=flops, transcendentals=0,
                           bytes_accessed=bytes_accessed)

    # Single kernel invocation (grid=()): every operand is a full-array VMEM
    # block; total footprint is a few KB, far under any VMEM limit.
    emb2d, lab2d = pl.pallas_call(
        _embed_kernel,
        out_shape=(
            jax.ShapeDtypeStruct((B * T, hid), jnp.float32),
            jax.ShapeDtypeStruct((B * L, hid), jnp.float32),
        ),
        cost_estimate=cost,
    )(patches2d, w_hk, consts, lab.astype(jnp.float32))

    # Reshape to the module's 3D output layout (free metadata outside kernel).
    emb = emb2d.reshape(B, T, hid)
    lab_emb = lab2d.reshape(B, L, hid)

    # Dropout / Dropout_lab: identity at inference time.
    return emb, lab_emb


# --------------------------- pure-JAX reference ------------------------------

def embeddings_reference(img, lab, params, patch_size):
    B, C, H, W = img.shape
    ph, pw = patch_size
    hid = params["conv_b"].shape[0]
    patches = _extract_patches(img, ph, pw)
    w_mat = params["conv_w"].reshape(hid, C * ph * pw).T
    patch_emb = patches @ w_mat + params["conv_b"][None, None, :]
    cls = jnp.broadcast_to(params["cls_token"], (B, 1, hid))
    emb = jnp.concatenate([cls, patch_emb], axis=1) + params["pos_emb"]
    lab_emb = (lab[..., None] @ params["lab_w"].T[None]
               + params["lab_b"][None, None, :]) + params["pe_lab"]
    return emb, lab_emb


# ---------------------------------- main -------------------------------------

if __name__ == "__main__":
    # config: hidden_size=32, patches.size=(4,4), img_size=16, in_channels=1,
    #         lab_len=8, dropout inactive (eval).
    B, C, H, W = 2, 1, 16, 16
    ph, pw = 4, 4
    hid = 32
    num_lab = 8
    n_patches = (H // ph) * (W // pw)

    key = jax.random.PRNGKey(0)
    k_img, k_lab, k_cw, k_cb, k_lw, k_lb, k_pos, k_pel, k_cls = jax.random.split(key, 9)

    img = jax.random.normal(k_img, (B, C, H, W), dtype=jnp.float32)
    lab = jax.random.normal(k_lab, (B, num_lab), dtype=jnp.float32)

    params = {
        # Conv2d(in_channels=1, out_channels=hid, kernel=stride=(4,4))
        "conv_w": 0.1 * jax.random.normal(k_cw, (hid, C, ph, pw), dtype=jnp.float32),
        "conv_b": 0.1 * jax.random.normal(k_cb, (hid,), dtype=jnp.float32),
        # Linear(1, hid)
        "lab_w": 0.1 * jax.random.normal(k_lw, (hid, 1), dtype=jnp.float32),
        "lab_b": 0.1 * jax.random.normal(k_lb, (hid,), dtype=jnp.float32),
        # nn.Parameter tensors (zeros in the module; random here for a nontrivial test)
        "pos_emb": 0.02 * jax.random.normal(k_pos, (1, 1 + n_patches, hid), dtype=jnp.float32),
        "pe_lab": 0.02 * jax.random.normal(k_pel, (1, num_lab, hid), dtype=jnp.float32),
        "cls_token": 0.02 * jax.random.normal(k_cls, (1, 1, hid), dtype=jnp.float32),
    }

    emb, lab_emb = embeddings_forward(img, lab, params, (ph, pw))
    emb = jax.block_until_ready(emb)
    lab_emb = jax.block_until_ready(lab_emb)

    emb_ref, lab_ref = embeddings_reference(img, lab, params, (ph, pw))
    assert emb.shape == (B, 1 + n_patches, hid)
    assert lab_emb.shape == (B, num_lab, hid)
    # Patch path uses bf16 MXU inputs (f32 accumulation) -> loosened tolerance.
    assert jnp.allclose(emb, emb_ref, atol=3e-2), "patch embedding mismatch"
    # Lab path is pure f32.
    assert jnp.allclose(lab_emb, lab_ref, atol=1e-5), "lab embedding mismatch"

    print("KERNEL_OK")
</pallas_src>

<mosaic_0001>
module attributes {stable_mosaic.version = 11 : i64} {
  func.func @_embed_kernel(%arg0: memref<34x16xbf16, #tpu.memory_space<vmem>>, %arg1: memref<32x16xbf16, #tpu.memory_space<vmem>>, %arg2: memref<43x32xf32, #tpu.memory_space<vmem>>, %arg3: memref<2x8xf32, #tpu.memory_space<vmem>>, %arg4: memref<34x32xf32, #tpu.memory_space<vmem>>, %arg5: memref<16x32xf32, #tpu.memory_space<vmem>>) attributes {dimension_semantics = [], scalar_prefetch = 0 : i64, scratch_operands = 0 : i64, tpu.core_type = #tpu.core_type<tc>} {
    %c0 = arith.constant 0 : index
    %c0_0 = arith.constant 0 : index
    %0 = vector.load %arg2[%c0, %c0_0] : memref<43x32xf32, #tpu.memory_space<vmem>>, vector<43x32xf32>
    %1 = vector.extract_strided_slice %0 {offsets = [0, 0], sizes = [34, 32], strides = [1, 1]} : vector<43x32xf32> to vector<34x32xf32>
    %2 = vector.extract_strided_slice %0 {offsets = [34, 0], sizes = [1, 32], strides = [1, 1]} : vector<43x32xf32> to vector<1x32xf32>
    %3 = vector.extract_strided_slice %0 {offsets = [35, 0], sizes = [8, 32], strides = [1, 1]} : vector<43x32xf32> to vector<8x32xf32>
    %c0_1 = arith.constant 0 : index
    %c0_2 = arith.constant 0 : index
    %4 = vector.load %arg0[%c0_1, %c0_2] : memref<34x16xbf16, #tpu.memory_space<vmem>>, vector<34x16xbf16>
    %c0_3 = arith.constant 0 : index
    %c0_4 = arith.constant 0 : index
    %5 = vector.load %arg1[%c0_3, %c0_4] : memref<32x16xbf16, #tpu.memory_space<vmem>>, vector<32x16xbf16>
    %cst = arith.constant dense<0.000000e+00> : vector<34x32xf32>
    %6 = tpu.matmul %4, %5, %cst {dimension_numbers = #tpu.dot_dimension_numbers<[1], [1], [0], [0], [0, 0, 1, 0], [], []>} : vector<34x16xbf16>, vector<32x16xbf16>, vector<34x32xf32> -> vector<34x32xf32>
    %7 = arith.addf %6, %1 : vector<34x32xf32>
    %c0_5 = arith.constant 0 : index
    %c0_6 = arith.constant 0 : index
    %8 = vector.load %arg4[%c0_5, %c0_6] : memref<34x32xf32, #tpu.memory_space<vmem>>, vector<34x32xf32>
    tpu.vector_store %arg4[%c0_5, %c0_6], %7 {strides = array<i32>} : memref<34x32xf32, #tpu.memory_space<vmem>>, vector<34x32xf32>,
    %c0_7 = arith.constant 0 : index
    %c0_8 = arith.constant 0 : index
    %9 = vector.load %arg3[%c0_7, %c0_8] : memref<2x8xf32, #tpu.memory_space<vmem>>, vector<2x8xf32>
    %10 = vector.shape_cast %9 : vector<2x8xf32> to vector<2x8x1xf32>
    %11 = vector.shape_cast %2 : vector<1x32xf32> to vector<1x1x32xf32>
    %12 = vector.broadcast %10 : vector<2x8x1xf32> to vector<2x8x32xf32>
    %13 = vector.broadcast %11 : vector<1x1x32xf32> to vector<2x8x32xf32>
    %14 = arith.mulf %12, %13 : vector<2x8x32xf32>
    %15 = vector.shape_cast %3 : vector<8x32xf32> to vector<1x8x32xf32>
    %16 = vector.broadcast %15 : vector<1x8x32xf32> to vector<2x8x32xf32>
    %17 = arith.addf %14, %16 : vector<2x8x32xf32>
    %18 = vector.shape_cast %17 : vector<2x8x32xf32> to vector<16x32xf32>
    %c0_9 = arith.constant 0 : index
    %c0_10 = arith.constant 0 : index
    %19 = vector.load %arg5[%c0_9, %c0_10] : memref<16x32xf32, #tpu.memory_space<vmem>>, vector<16x32xf32>
    tpu.vector_store %arg5[%c0_9, %c0_10], %18 {strides = array<i32>} : memref<16x32xf32, #tpu.memory_space<vmem>>, vector<16x32xf32>,
    return
  }
}

</mosaic_0001>

<llo_original>
// kernel: tpu_custom_call.1
$region0: #{tpu_custom_call.1}
  #allocation0 [shape = 'u32[]', space=smem, size = 0x4, offset = 0x4, fixed_abs, tag = 'smem constant byte address 0x4 - core index']
  #allocation1 [shape = 'u32[144,128]{1,0:T(1,128)}', space=vmem, size = 0x12000, scoped, tag = 'internal scratch']
  %s0 = inlined_call_operand.vmem [shape: bf16[34,16], index: 0, kind: input, shape index: {}]
  %s1 = inlined_call_operand.vmem [shape: bf16[32,16], index: 1, kind: input, shape index: {}]
  %s2 = inlined_call_operand.vmem [shape: f32[43,32], index: 2, kind: input, shape index: {}]
  %s3 = inlined_call_operand.vmem [shape: f32[2,8], index: 3, kind: input, shape index: {}]
  %s4 = inlined_call_operand.vmem [shape: f32[34,32], index: 4, kind: output, shape index: {0}]
  %s5 = inlined_call_operand.hbm [shape: f32[16,32], index: 5, kind: output, shape index: {1}]
  %6 = xla_tuple %s4, %s5
  %s7 = sld [smem:[#allocation0]]
  $region34: #{tpu_custom_call.1} parent=0
    _
  %s9 = ssub.s32 1, %s7
  %s10 = scalar_select 0, %s9, %s7
  $region1: #{tpu_custom_call.1} parent=0
    #allocation2 [shape = 'u8[8192]{0}', space=vmem, size = 0x2000, scoped, tag = 'output window, operand 1, single buffered']
    #allocation3 [shape = 's32[1]{0}', space=sflag, size = 0x4, scoped, tag = 'scoped memory for tpu_custom_call.1']
    %11 = vsyncpa [#allocation3], 0
    // Predicated region
    $region2: #{tpu_custom_call.1} parent=1 // pred_check
      _
    $region3: #{tpu_custom_call.1} parent=1 // pred_check_branch
      %13 = sbr.rel (0) target = $region5
    $region4: #{tpu_custom_call.1} parent=1 // pred_region
      _
    $region5: #{tpu_custom_call.1} parent=1 // pred_fallthru
      _
    // Predicated region
    $region6: #{tpu_custom_call.1} parent=1 // pred_check
      _
    $region7: #{tpu_custom_call.1} parent=1 // pred_check_branch
      %15 = sbr.rel (0) target = $region9
    $region8: #{tpu_custom_call.1} parent=1 // pred_region
      _
    $region9: #{tpu_custom_call.1} parent=1 // pred_fallthru
      _
    // Predicated region
    $region10: #{tpu_custom_call.1} parent=1 // pred_check
      _
    $region11: #{tpu_custom_call.1} parent=1 // pred_check_branch
      %17 = sbr.rel (0) target = $region13
    $region12: #{tpu_custom_call.1} parent=1 // pred_region
      _
    $region13: #{tpu_custom_call.1} parent=1 // pred_fallthru
      _
    // Predicated region
    $region14: #{tpu_custom_call.1} parent=1 // pred_check
      _
    $region15: #{tpu_custom_call.1} parent=1 // pred_check_branch
      %19 = sbr.rel (0) target = $region17
    $region16: #{tpu_custom_call.1} parent=1 // pred_region
      _
    $region17: #{tpu_custom_call.1} parent=1 // pred_fallthru
      _
    %v21 = vld [vmem:[%s2] sm:$0xff]
    %v22 = vld [vmem:[%s2 + $0x8] sm:$0xff]
    %v23 = vld [vmem:[%s2 + $0x10] sm:$0xff]
    %v24 = vld [vmem:[%s2 + $0x18] sm:$0xff]
    %v25 = vld [vmem:[%s2 + $0x20] sm:$0xff]
    %v26 = vld [vmem:[%s2 + $0x28] sm:$0x7]
    %v27 = vld [vmem:[%s0] sm:$0xf]
    %v28 = vld [vmem:[%s0 + $0x4] sm:$0xf]
    %v29 = vld [vmem:[%s0 + $0x8] sm:$0xf]
    %v30 = vld [vmem:[%s0 + $0xc] sm:$0xf]
    %v31 = vld [vmem:[%s0 + $0x10] sm:$0x1]
    %v32 = vld [vmem:[%s1] sm:$0xf]
    %v33 = vld [vmem:[%s1 + $0x4] sm:$0xf]
    %v34 = vld [vmem:[%s1 + $0x8] sm:$0xf]
    %v35 = vld [vmem:[%s1 + $0xc] sm:$0xf]
    %v41 = vunpack.c.l.b16 %v27
    %v42 = vunpack.c.l.b16 %v28
    %v43 = vunpack.c.l.b16 %v29
    %v44 = vunpack.c.l.b16 %v30
    %v45 = vunpack.c.l.b16 %v31
    %v46 = vpack.c.b16 %v42, %v41
    %v47 = vpack.c.b16 %v44, %v43
    %v48 = vpack.c.b16 %v45, %v45
    %v53 = vunpack.c.l.b16 %v32
    %v54 = vunpack.c.l.b16 %v33
    %v55 = vunpack.c.l.b16 %v34
    %v56 = vunpack.c.l.b16 %v35
    %v57 = vpack.c.b16 %v54, %v53
    %v58 = vpack.c.b16 %v56, %v55
    %vm59 = vcmask 130048
    %v61 = vsel %vm59, %v46, 0
    %v64 = vsel %vm59, %v47, 0
    %v67 = vsel %vm59, %v48, 0
    %v70 = vsel %vm59, %v57, 0
    %v73 = vsel %vm59, %v58, 0
    %75 = vmatprep.subr.bf16.mxu0 0
    %76 = vmatpush1.bf16.xpose.msra.mxu0 0
    %77 = vmatprep.subr.bf16.mxu0 0
    %78 = vmatpush1.bf16.xpose.msra.mxu0 0
    %79 = vmatprep.subr.bf16.mxu0 0
    %80 = vmatpush1.bf16.xpose.msra.mxu0 0
    %81 = vmatprep.subr.bf16.mxu0 0
    %82 = vmatpush1.bf16.xpose.msra.mxu0 0
    %83 = vmatprep.subr.bf16.mxu0 0
    %84 = vmatpush1.bf16.xpose.msra.mxu0 0
    %85 = vmatprep.subr.bf16.mxu0 0
    %86 = vmatpush1.bf16.xpose.msra.mxu0 0
    %87 = vmatprep.subr.bf16.mxu0 0
    %88 = vmatpush1.bf16.xpose.msra.mxu0 %v73
    %89 = vmatprep.subr.bf16.mxu0 0
    %90 = vmatpush1.bf16.xpose.msra.mxu0 %v70
    %91 = vmatprep.subr.bf16.mxu0 0
    %92 = vmatpush2.bf16.xpose.msra.mxu0 0
    %93 = vmatprep.subr.bf16.mxu0 0
    %94 = vmatpush2.bf16.xpose.msra.mxu0 0
    %95 = vmatprep.subr.bf16.mxu0 0
    %96 = vmatpush2.bf16.xpose.msra.mxu0 0
    %97 = vmatprep.subr.bf16.mxu0 0
    %98 = vmatpush2.bf16.xpose.msra.mxu0 0
    %99 = vmatprep.subr.bf16.mxu0 0
    %100 = vmatpush2.bf16.xpose.msra.mxu0 0
    %101 = vmatprep.subr.bf16.mxu0 0
    %102 = vmatpush2.bf16.xpose.msra.mxu0 0
    %103 = vmatprep.subr.bf16.mxu0 0
    %104 = vmatpush2.bf16.xpose.msra.mxu0 0
    %105 = vmatprep.subr.bf16.mxu0 0
    %106 = vmatpush2.bf16.xpose.msra.mxu0 0
    %107 = vmatprep.mubr.bf16.mxu0 0
    %108 = vmatmul.mubr.bf16.gmra.mxu0 %v61
    %v109 = vpop.f32.mrf.mxu0
    %v110 = vadd.f32 %v21, %v109
    %v111 = vpop.f32.mrf.mxu0
    %v112 = vpop.f32.mrf.mxu0
    %v113 = vadd.f32 %v22, %v112
    %v114 = vpop.f32.mrf.mxu0
    %115 = vmatprep.mubr.bf16.mxu0 0
    %116 = vmatmul.mubr.bf16.gmra.mxu0 %v64
    %v117 = vpop.f32.mrf.mxu0
    %v118 = vadd.f32 %v23, %v117
    %v119 = vpop.f32.mrf.mxu0
    %v120 = vpop.f32.mrf.mxu0
    %v121 = vadd.f32 %v24, %v120
    %v122 = vpop.f32.mrf.mxu0
    %123 = vmatprep.mubr.bf16.mxu0 0
    %124 = vmatmul.mubr.bf16.gmra.mxu0 %v67
    %v125 = vpop.f32.mrf.mxu0
    %v126 = vadd.f32 %v25, %v125
    %v127 = vpop.f32.mrf.mxu0
    %v128 = vpop.f32.mrf.mxu0
    %v129 = vpop.f32.mrf.mxu0
    %130 = vdwg.mxu0
    %vm131 = vcmask 261120
    %132 = vst.msk [vmem:[%s4] sm:$0xff] %vm131, %v110
    %133 = vst.msk [vmem:[%s4 + $0x8] sm:$0xff] %vm131, %v113
    %134 = vst.msk [vmem:[%s4 + $0x10] sm:$0xff] %vm131, %v118
    %135 = vst.msk [vmem:[%s4 + $0x18] sm:$0xff] %vm131, %v121
    %vm136 = vcmask 254976
    %137 = vst.msk [vmem:[%s4 + $0x20] sm:$0x3] %vm136, %v126
    %v138 = vld [vmem:[%s3] sm:$0x3]
    %v139 = vlaneseq
    %v140 = vshrl.u32 %v139, 7
    %v141 = vsub.s32 0, %v140
    %v142 = vrot.slane %v138, %v141
    %144 = vbcast.lane.b32.xlu0 %v142, 256
    %v145 = vpop.permute.xlu0 %144
    %v146 = vlaneseq
    %v147 = vshrl.u32 %v146, 7
    %v148 = vsub.s32 1, %v147
    %v149 = vrot.slane %v138, %v148
    %151 = vbcast.lane.b32.xlu0 %v149, 256
    %v152 = vpop.permute.xlu0 %151
    %v153 = vlaneseq
    %v154 = vshrl.u32 %v153, 7
    %v155 = vsub.s32 2, %v154
    %v156 = vrot.slane %v25, %v155
    %v157 = vmul.f32 %v145, %v156
    %v158 = vmul.f32 %v152, %v156
    %vm161 = vcmask 1044480
    %v162 = vrot.slane %v25, 3
    %v163 = vrot.slane %v26, 3
    %v164 = vsel %vm161, %v162, %v163
    %v166 = vadd.f32 %v157, %v164
    %v167 = vadd.f32 %v158, %v164
    %168 = vst.msk [vmem:[#allocation2] sm:$0xff] %vm131, %v166
    %169 = vst.msk [vmem:[#allocation2 + $0x8] sm:$0xff] %vm131, %v167
    // Predicated region
    $region18: #{tpu_custom_call.1} parent=1 // pred_check
      _
    $region19: #{tpu_custom_call.1} parent=1 // pred_check_branch
      %171 = sbr.rel (0) target = $region21
    $region20: #{tpu_custom_call.1} parent=1 // pred_region
      _
    $region21: #{tpu_custom_call.1} parent=1 // pred_fallthru
      _
    // Predicated region
    $region22: #{tpu_custom_call.1} parent=1 // pred_check
      _
    $region23: #{tpu_custom_call.1} parent=1 // pred_check_branch
      %173 = sbr.rel (0) target = $region25
    $region24: #{tpu_custom_call.1} parent=1 // pred_region
      %s175 = ssub.s32 256, 256
      %176 = vsyncadd [#allocation3], %s175
      %s177 = sshll.u32 [#allocation2], 4
      %s178 = int_to_ptr.vmem [resolvable:$true] %s177
      %183 = dma.vmem_to_hbm [thread:$0]  %s178, 256, %s5, [#allocation3], 128, 128, 8
    $region25: #{tpu_custom_call.1} parent=1 // pred_fallthru
      _
    // Predicated region
    $region26: #{tpu_custom_call.1} parent=1 // pred_check
      _
    $region27: #{tpu_custom_call.1} parent=1 // pred_check_branch
      %185 = sbr.rel (0) target = $region29
    $region28: #{tpu_custom_call.1} parent=1 // pred_region
      _
    $region29: #{tpu_custom_call.1} parent=1 // pred_fallthru
      _
    // Predicated region
    $region30: #{tpu_custom_call.1} parent=1 // pred_check
      _
    $region31: #{tpu_custom_call.1} parent=1 // pred_check_branch
      %187 = sbr.rel (0) target = $region33
    $region32: #{tpu_custom_call.1} parent=1 // pred_region
      %188 = dma.done [#allocation3], 256
    $region33: #{tpu_custom_call.1} parent=1 // pred_fallthru
      _
    %189 = vsyncpa [#allocation3], 1

</llo_original>
